<compile_context>
chip_gen: v6e
topology: v6e:2x2x1
jax: 0.10.0
libtpu: 0.0.40
codegen_flags: <defaults>
</compile_context>

<pallas_src>
import functools
import math

import jax
import jax.numpy as jnp
import numpy as np
from jax.experimental import pallas as pl
from jax.experimental.pallas import tpu as pltpu


def _cdiv(a, b):
    return -(-a // b)


def _text_gating_kernel(text_ref, featmid_ref, wt_ref, *rest, gating_type):
    """One grid step: TR flattened (seq, batch) rows of the gating forward.

    text_ref:    (TR, Dt)  text rows (native dtype)
    featmid_ref: (TR, M)   feat2mid(feat) tiled over the TR rows (f32)
    wt_ref:      (Dt, M)   W_text^T (native dtype)
    rest:        mlp: (wm_ref (1, M) f32, out_ref (1, 1, TR))
                 dot: (out_ref (1, 1, TR),)
    """
    if gating_type == "mlp":
        wm_ref, out_ref = rest
    else:
        (out_ref,) = rest

    # Main MXU matmul: (TR, Dt) x (Dt, M) with f32 accumulation.
    t_mid = jnp.dot(text_ref[...], wt_ref[...],
                    preferred_element_type=jnp.float32)            # (TR, M)
    f_mid = featmid_ref[...]                                       # (TR, M) f32

    if gating_type == "mlp":
        v = jnp.tanh(t_mid + f_mid)                                # att_activ='tanh'
        w_row = wm_ref[...]                                        # (1, M)
    else:  # 'dot': per-row dot product of t_mid and f_mid
        v = t_mid * f_mid
        w_row = jnp.ones((1, v.shape[-1]), dtype=jnp.float32)

    # (1, M) contracted with (TR, M) on M -> (1, TR): logits come out lane-dense,
    # so the store below is a full-lane store (no trailing-1 output dim).
    logit = jax.lax.dot_general(
        w_row, v, dimension_numbers=(((1,), (1,)), ((), ())),
        preferred_element_type=jnp.float32)                        # (1, TR)
    out_ref[0] = jax.nn.sigmoid(logit).astype(out_ref.dtype)


def _choose_block_rows(S, B, Dt, itemsize):
    """Rows of the flattened (S*B, Dt) text processed per grid step."""
    rows = S * B
    # TR must be a multiple of B (so the tiled feat_mid lines up with row % B)
    # and of 8 (sublane tiling of the text block).
    unit = B * 8 // math.gcd(B, 8)
    # Enough rows to fill the MXU / amortize ~0.35us per-step overhead, capped so
    # one double-buffered text tile stays small (conservative for v7x VMEM).
    target_rows = 512
    vmem_per_buffer = 4 * 1024 * 1024
    max_rows = max(unit, vmem_per_buffer // max(1, Dt * itemsize))
    tr = min(target_rows, max_rows)
    tr = max(unit, (tr // unit) * unit)
    tr = min(tr, _cdiv(rows, unit) * unit)
    # Prefer >= 2 grid steps (v7x has two TensorCores) when there is enough work.
    while tr > unit and _cdiv(rows, tr) < 2:
        tr = max(unit, ((tr // 2) // unit) * unit)
    return tr


def text_gating(feat, text_hidden, w_text, w_feat, w_mlp=None, gating_type="mlp"):
    """Pallas TextGating forward (eval mode; dropout is identity).

    feat:        (1, B, feat_dim)
    text_hidden: (S, B, text_dim)
    w_text:      (mid, text_dim)   -- nn.Linear weight layout (out, in)
    w_feat:      (mid, feat_dim)
    w_mlp:       (1, mid)          -- only used (and only DMA'd) for gating_type='mlp'
    returns weight: (S, B)
    """
    S, B, Dt = text_hidden.shape
    Df = feat.shape[-1]
    M = w_text.shape[0]
    out_dtype = text_hidden.dtype
    itemsize = jnp.dtype(text_hidden.dtype).itemsize

    # Hoist the sequence-invariant feat branch: one tiny (B, Df) x (Df, M) matmul.
    feat2d = feat.reshape(B, Df)
    feat_mid = jnp.dot(feat2d, jnp.asarray(w_feat, feat2d.dtype).T,
                       preferred_element_type=jnp.float32)         # (B, M) f32

    tr = _choose_block_rows(S, B, Dt, itemsize)
    ts = tr // B                                                   # seq positions / step
    rows = S * B
    num_blocks = _cdiv(rows, tr)
    rows_pad = num_blocks * tr

    text2d = text_hidden.reshape(rows, Dt)
    if rows_pad != rows:
        text2d = jnp.pad(text2d, ((0, rows_pad - rows), (0, 0)))

    # feat_mid replicated over one block of rows: row j of any block has batch j % B
    # (blocks are TR rows, TR % B == 0, so alignment holds for every grid step).
    feat_tile = jnp.tile(feat_mid, (ts, 1))                        # (TR, M) f32
    wt_t = jnp.asarray(w_text, text_hidden.dtype).T                # (Dt, M) native

    inputs = [text2d, feat_tile, wt_t]
    in_specs = [
        pl.BlockSpec((tr, Dt), lambda i: (i, 0)),   # streamed text tile
        pl.BlockSpec((tr, M), lambda i: (0, 0)),    # constant block (fetched once)
        pl.BlockSpec((Dt, M), lambda i: (0, 0)),    # constant block (fetched once)
    ]
    if gating_type == "mlp":
        inputs.append(jnp.asarray(w_mlp, jnp.float32).reshape(1, M))
        in_specs.append(pl.BlockSpec((1, M), lambda i: (0, 0)))
    # ('dot' path: w_mlp is neither passed nor DMA'd.)

    kernel = functools.partial(_text_gating_kernel, gating_type=gating_type)
    out = pl.pallas_call(
        kernel,
        out_shape=jax.ShapeDtypeStruct((num_blocks, 1, tr), out_dtype),
        grid=(num_blocks,),
        in_specs=in_specs,
        out_specs=pl.BlockSpec((1, 1, tr), lambda i: (i, 0, 0)),
        compiler_params=pltpu.CompilerParams(
            dimension_semantics=("parallel",)),
    )(*inputs)

    return out.reshape(rows_pad)[:rows].reshape(S, B)


def text_gating_ref(feat, text_hidden, w_text, w_feat, w_mlp, gating_type="mlp"):
    """Pure-JAX reference mirroring the PyTorch forward (eval mode)."""
    text_ = jnp.einsum("sbd,md->sbm", text_hidden, w_text)   # text2mid
    feat_ = jnp.einsum("xbd,md->xbm", feat, w_feat)          # feat2mid, (1,B,M)
    if gating_type == "dot":
        return jax.nn.sigmoid(jnp.einsum("bm,sbm->sb", feat_[0], text_))
    inner = jnp.tanh(text_ + feat_)
    return jax.nn.sigmoid(jnp.einsum("sbm,om->sbo", inner, w_mlp)[..., 0])


if __name__ == "__main__":
    key = jax.random.PRNGKey(0)
    S, B = 8, 2
    text_dim, feat_dim, mid_dim = 32, 16, 32

    k1, k2, k3, k4, k5 = jax.random.split(key, 5)
    text_hidden = jax.random.normal(k1, (S, B, text_dim), jnp.float32)
    feat = jax.random.normal(k2, (1, B, feat_dim), jnp.float32)

    # nn.Linear(bias=False) default init: U(-1/sqrt(fan_in), 1/sqrt(fan_in))
    w_text = jax.random.uniform(
        k3, (mid_dim, text_dim), jnp.float32,
        -1.0 / math.sqrt(text_dim), 1.0 / math.sqrt(text_dim))
    w_feat = jax.random.uniform(
        k4, (mid_dim, feat_dim), jnp.float32,
        -1.0 / math.sqrt(feat_dim), 1.0 / math.sqrt(feat_dim))
    w_mlp = jax.random.uniform(
        k5, (1, mid_dim), jnp.float32,
        -1.0 / math.sqrt(mid_dim), 1.0 / math.sqrt(mid_dim))

    for gating_type in ("mlp", "dot"):
        out = text_gating(feat, text_hidden, w_text, w_feat, w_mlp, gating_type)
        out = jax.block_until_ready(out)
        ref = text_gating_ref(feat, text_hidden, w_text, w_feat, w_mlp, gating_type)
        assert out.shape == (S, B), out.shape
        np.testing.assert_allclose(np.asarray(out), np.asarray(ref),
                                   rtol=1e-5, atol=1e-5)

    print("KERNEL_OK")
</pallas_src>

<mosaic_0001>
module attributes {stable_mosaic.version = 11 : i64} {
  func.func @_text_gating_kernel(%arg0: i32, %arg1: memref<8x32xf32, #tpu.memory_space<vmem>>, %arg2: memref<8x32xf32, #tpu.memory_space<vmem>>, %arg3: memref<32x32xf32, #tpu.memory_space<vmem>>, %arg4: memref<1x32xf32, #tpu.memory_space<vmem>>, %arg5: memref<1x1x8xf32, #tpu.memory_space<vmem>>) attributes {dimension_semantics = [#tpu.dimension_semantics<parallel>], iteration_bounds = array<i64: 2>, scalar_prefetch = 0 : i64, scratch_operands = 0 : i64, tpu.core_type = #tpu.core_type<tc>, window_params = [{transform_indices = @transform_0, window_bounds = array<i64: 8, 32>}, {pipeline_mode = #tpu.pipeline_mode<synchronous>, transform_indices = @transform_1, window_bounds = array<i64: 8, 32>}, {pipeline_mode = #tpu.pipeline_mode<synchronous>, transform_indices = @transform_2, window_bounds = array<i64: 32, 32>}, {pipeline_mode = #tpu.pipeline_mode<synchronous>, transform_indices = @transform_3, window_bounds = array<i64: 1, 32>}, {transform_indices = @transform_4, window_bounds = array<i64: 1, 1, 8>}]} {
    %c0 = arith.constant 0 : index
    %c0_0 = arith.constant 0 : index
    %0 = vector.load %arg1[%c0, %c0_0] : memref<8x32xf32, #tpu.memory_space<vmem>>, vector<8x32xf32>
    %c0_1 = arith.constant 0 : index
    %c0_2 = arith.constant 0 : index
    %1 = vector.load %arg3[%c0_1, %c0_2] : memref<32x32xf32, #tpu.memory_space<vmem>>, vector<32x32xf32>
    %cst = arith.constant dense<0.000000e+00> : vector<8x32xf32>
    %2 = tpu.matmul %0, %1, %cst {dimension_numbers = #tpu.dot_dimension_numbers<[1], [0], [0], [1], [0, 0, 1, 1], [], []>} : vector<8x32xf32>, vector<32x32xf32>, vector<8x32xf32> -> vector<8x32xf32>
    %c0_3 = arith.constant 0 : index
    %c0_4 = arith.constant 0 : index
    %3 = vector.load %arg2[%c0_3, %c0_4] : memref<8x32xf32, #tpu.memory_space<vmem>>, vector<8x32xf32>
    %4 = arith.addf %2, %3 : vector<8x32xf32>
    %5 = math.tanh %4 : vector<8x32xf32>
    %c0_5 = arith.constant 0 : index
    %c0_6 = arith.constant 0 : index
    %6 = vector.load %arg4[%c0_5, %c0_6] : memref<1x32xf32, #tpu.memory_space<vmem>>, vector<1x32xf32>
    %cst_7 = arith.constant dense<0.000000e+00> : vector<1x8xf32>
    %7 = tpu.matmul %6, %5, %cst_7 {dimension_numbers = #tpu.dot_dimension_numbers<[1], [1], [0], [0], [0, 0, 1, 0], [], []>} : vector<1x32xf32>, vector<8x32xf32>, vector<1x8xf32> -> vector<1x8xf32>
    %8 = arith.negf %7 : vector<1x8xf32>
    %9 = math.exp %8 : vector<1x8xf32>
    %cst_8 = arith.constant 1.000000e+00 : f32
    %10 = vector.broadcast %cst_8 : f32 to vector<1x8xf32>
    %11 = arith.addf %10, %9 : vector<1x8xf32>
    %12 = arith.divf %10, %11 : vector<1x8xf32>
    %c0_9 = arith.constant 0 : index
    %c0_10 = arith.constant 0 : index
    %c0_11 = arith.constant 0 : index
    %13 = vector.load %arg5[%c0_9, %c0_10, %c0_11] : memref<1x1x8xf32, #tpu.memory_space<vmem>>, vector<1x1x8xf32>
    %14 = vector.shape_cast %13 : vector<1x1x8xf32> to vector<1x8xf32>
    %15 = vector.shape_cast %12 : vector<1x8xf32> to vector<1x1x8xf32>
    tpu.vector_store %arg5[%c0_9, %c0_10, %c0_11], %15 {strides = array<i32>} : memref<1x1x8xf32, #tpu.memory_space<vmem>>, vector<1x1x8xf32>,
    return
  }
  func.func @transform_0(%arg0: i32) -> (i32, i32) {
    %c0_i32 = arith.constant 0 : i32
    %c0_i32_0 = arith.constant 0 : i32
    return %arg0, %c0_i32 : i32, i32
  }
  func.func @transform_1(%arg0: i32) -> (i32, i32) {
    %c0_i32 = arith.constant 0 : i32
    %c0_i32_0 = arith.constant 0 : i32
    %c0_i32_1 = arith.constant 0 : i32
    return %c0_i32, %c0_i32_0 : i32, i32
  }
  func.func @transform_2(%arg0: i32) -> (i32, i32) {
    %c0_i32 = arith.constant 0 : i32
    %c0_i32_0 = arith.constant 0 : i32
    %c0_i32_1 = arith.constant 0 : i32
    return %c0_i32, %c0_i32_0 : i32, i32
  }
  func.func @transform_3(%arg0: i32) -> (i32, i32) {
    %c0_i32 = arith.constant 0 : i32
    %c0_i32_0 = arith.constant 0 : i32
    %c0_i32_1 = arith.constant 0 : i32
    return %c0_i32, %c0_i32_0 : i32, i32
  }
  func.func @transform_4(%arg0: i32) -> (i32, i32, i32) {
    %c0_i32 = arith.constant 0 : i32
    %c0_i32_0 = arith.constant 0 : i32
    %c0_i32_1 = arith.constant 0 : i32
    return %arg0, %c0_i32, %c0_i32_0 : i32, i32, i32
  }
}

</mosaic_0001>

<llo_original>
// kernel: tpu_custom_call.1
$region0: #{tpu_custom_call.1}
  #allocation0 [shape = 'u32[]', space=smem, size = 0x4, offset = 0x4, fixed_abs, tag = 'smem constant byte address 0x4 - core index']
  #allocation1 [shape = 'u32[144,128]{1,0:T(1,128)}', space=vmem, size = 0x12000, scoped, tag = 'internal scratch']
  %s0 = inlined_call_operand.hbm [shape: f32[16,32], index: 0, kind: input, shape index: {}]
  %s1 = inlined_call_operand.hbm [shape: f32[8,32], index: 1, kind: input, shape index: {}]
  %s2 = inlined_call_operand.hbm [shape: f32[32,32], index: 2, kind: input, shape index: {}]
  %s3 = inlined_call_operand.vmem [shape: f32[1,32], index: 3, kind: input, shape index: {}]
  %s4 = inlined_call_operand.hbm [shape: f32[2,1,8], index: 4, kind: output, shape index: {}]
  %s5 = sld [smem:[#allocation0]]
  $region61: #{tpu_custom_call.1} parent=0
    _
  %s7 = ssub.s32 1, %s5
  %s8 = scalar_select 0, %s7, %s5
  $region1: #{tpu_custom_call.1} parent=0
    #allocation2 [shape = 'u8[8192]{0}', space=vmem, size = 0x2000, scoped, tag = 'input window, operand 0']
    #allocation3 [shape = 's32[2]{0}', space=sflag, size = 0x8, scoped, tag = 'scoped memory for tpu_custom_call.1']
    #allocation4 [shape = 's32[2]{0}', space=sflag, size = 0x8, scoped, tag = 'scoped memory for tpu_custom_call.1']
    #allocation5 [shape = 'u8[4096]{0}', space=vmem, size = 0x1000, scoped, tag = 'input window, operand 1, single buffered']
    #allocation6 [shape = 's32[1]{0}', space=sflag, size = 0x4, scoped, tag = 'scoped memory for tpu_custom_call.1']
    #allocation7 [shape = 'u8[16384]{0}', space=vmem, size = 0x4000, scoped, tag = 'input window, operand 2, single buffered']
    #allocation8 [shape = 'u8[1024]{0}', space=vmem, size = 0x400, scoped, tag = 'output window, operand 0']
    %9 = vsyncpa [#allocation3], 0
    %s10 = scalar_lea.sflag [#allocation3], 1
    %11 = vsyncpa %s10, 0
    %12 = vsyncpa [#allocation6], 0
    %13 = vsyncpa [#allocation4], 0
    %s14 = scalar_lea.sflag [#allocation4], 1
    %15 = vsyncpa %s14, 0
    loop: start=0, step=1, limit=4
    $region2: #{tpu_custom_call.1} parent=1 // loop_pre_header
      _
    $region3: #{tpu_custom_call.1} parent=1 // loop_header
      %s17 = sphi 0, %s21
      %p18 = scmp.ge.s32.totalorder %s17, 4
      %s27 = sphi 0, %s29
      %s30 = sphi 0, %s27
      %s31 = sphi 0, %s30
      %s47 = sphi 0, %s31
      %s51 = sphi 0, %s51
      %s53 = sphi 0, %s51
      %s54 = sphi 0, %s53
      %s68 = sphi 0, %s54
      %s72 = sphi 0, %s72
      %s74 = sphi 0, %s72
      %s75 = sphi 0, %s74
      %s89 = sphi 0, %s75
      %s93 = sphi 0, %s93
      %s95 = sphi 0, %s93
      %s96 = sphi 0, %s95
      %s110 = sphi 0, %s96
      %s116 = sphi 0, %s118
      %s119 = sphi 0, %s116
      %s120 = sphi 0, %s119
      %s136 = sphi 0, %s120
    $region4: #{tpu_custom_call.1} parent=1 // loop_header_branch
      %20 = sbr.rel (%p18) target = $region8
    $region5: #{tpu_custom_call.1} parent=1 // loop_body
      %s22 = ssub.s32 %s17, 1
      %s23 = ssub.s32 %s17, 2
      %s24 = sadd.s32 %s17, 1
      %s25 = ssub.s32 %s17, %s24
      %p26 = scmp.eq.s32.totalorder %s25, 0
      %s28 = sadd.s32 %s27, 1
      %s29 = scalar_select %p26, %s27, %s28
      %p32 = pneg %p26
      %p33 = scmp.eq.s32.totalorder %s17, 1
      %p34 = por %p32, %p33
      %p35 = scmp.ne.s32.totalorder %s27, %s30
      %p36 = scmp.eq.s32.totalorder %s17, 0
      %p37 = por %p35, %p36
      %p38 = scmp.ne.s32.totalorder %s27, %s30
      %p39 = scmp.eq.s32.totalorder %s22, 1
      %p40 = por %p38, %p39
      %p41 = scmp.ne.s32.totalorder %s30, %s31
      %p42 = scmp.eq.s32.totalorder %s22, 0
      %p43 = por %p41, %p42
      %p44 = scmp.ne.s32.totalorder %s30, %s31
      %p45 = scmp.eq.s32.totalorder %s23, 1
      %p46 = por %p44, %p45
      %p48 = scmp.ne.s32.totalorder %s31, %s47
      %p49 = scmp.eq.s32.totalorder %s23, 0
      %p50 = por %p48, %p49
      %s52 = sadd.s32 %s51, 1
      %p55 = scmp.eq.s32.totalorder %s17, 1
      %p56 = scmp.ne.s32.totalorder %s51, %s53
      %p57 = scmp.eq.s32.totalorder %s17, 0
      %p58 = por %p56, %p57
      %p59 = scmp.ne.s32.totalorder %s51, %s53
      %p60 = scmp.eq.s32.totalorder %s22, 1
      %p61 = por %p59, %p60
      %p62 = scmp.ne.s32.totalorder %s53, %s54
      %p63 = scmp.eq.s32.totalorder %s22, 0
      %p64 = por %p62, %p63
      %p65 = scmp.ne.s32.totalorder %s53, %s54
      %p66 = scmp.eq.s32.totalorder %s23, 1
      %p67 = por %p65, %p66
      %p69 = scmp.ne.s32.totalorder %s54, %s68
      %p70 = scmp.eq.s32.totalorder %s23, 0
      %p71 = por %p69, %p70
      %s73 = sadd.s32 %s72, 1
      %p76 = scmp.eq.s32.totalorder %s17, 1
      %p77 = scmp.ne.s32.totalorder %s72, %s74
      %p78 = scmp.eq.s32.totalorder %s17, 0
      %p79 = por %p77, %p78
      %p80 = scmp.ne.s32.totalorder %s72, %s74
      %p81 = scmp.eq.s32.totalorder %s22, 1
      %p82 = por %p80, %p81
      %p83 = scmp.ne.s32.totalorder %s74, %s75
      %p84 = scmp.eq.s32.totalorder %s22, 0
      %p85 = por %p83, %p84
      %p86 = scmp.ne.s32.totalorder %s74, %s75
      %p87 = scmp.eq.s32.totalorder %s23, 1
      %p88 = por %p86, %p87
      %p90 = scmp.ne.s32.totalorder %s75, %s89
      %p91 = scmp.eq.s32.totalorder %s23, 0
      %p92 = por %p90, %p91
      %s94 = sadd.s32 %s93, 1
      %p97 = scmp.eq.s32.totalorder %s17, 1
      %p98 = scmp.ne.s32.totalorder %s93, %s95
      %p99 = scmp.eq.s32.totalorder %s17, 0
      %p100 = por %p98, %p99
      %p101 = scmp.ne.s32.totalorder %s93, %s95
      %p102 = scmp.eq.s32.totalorder %s22, 1
      %p103 = por %p101, %p102
      %p104 = scmp.ne.s32.totalorder %s95, %s96
      %p105 = scmp.eq.s32.totalorder %s22, 0
      %p106 = por %p104, %p105
      %p107 = scmp.ne.s32.totalorder %s95, %s96
      %p108 = scmp.eq.s32.totalorder %s23, 1
      %p109 = por %p107, %p108
      %p111 = scmp.ne.s32.totalorder %s96, %s110
      %p112 = scmp.eq.s32.totalorder %s23, 0
      %p113 = por %p111, %p112
      %s114 = ssub.s32 %s17, %s24
      %p115 = scmp.eq.s32.totalorder %s114, 0
      %s117 = sadd.s32 %s116, 1
      %s118 = scalar_select %p115, %s116, %s117
      %p121 = pneg %p115
      %p122 = scmp.eq.s32.totalorder %s17, 1
      %p123 = por %p121, %p122
      %p124 = scmp.ne.s32.totalorder %s116, %s119
      %p125 = scmp.eq.s32.totalorder %s17, 0
      %p126 = por %p124, %p125
      %p127 = scmp.ne.s32.totalorder %s116, %s119
      %p128 = scmp.eq.s32.totalorder %s22, 1
      %p129 = por %p127, %p128
      %p130 = scmp.ne.s32.totalorder %s119, %s120
      %p131 = scmp.eq.s32.totalorder %s22, 0
      %p132 = por %p130, %p131
      %p133 = scmp.ne.s32.totalorder %s119, %s120
      %p134 = scmp.eq.s32.totalorder %s23, 1
      %p135 = por %p133, %p134
      %p137 = scmp.ne.s32.totalorder %s120, %s136
      %p138 = scmp.eq.s32.totalorder %s23, 0
      %p139 = por %p137, %p138
      %p140 = scmp.le.s32.totalorder 1, %s17
      %p141 = scmp.lt.s32.totalorder %s17, 3
      %p142 = pnand %p140, %p141
      %p143 = pneg %p142
      // Predicated region
      $region9: #{tpu_custom_call.1} parent=5 // pred_check
        _
      $region10: #{tpu_custom_call.1} parent=5 // pred_check_branch
        %145 = sbr.rel (%p142) target = $region12
      $region11: #{tpu_custom_call.1} parent=5 // pred_region
        %s146 = ssub.s32 %s17, 1
        // Predicated region
        $region13: #{tpu_custom_call.1} parent=11 // pred_check
          %p147 = pneg %p64
        $region14: #{tpu_custom_call.1} parent=11 // pred_check_branch
          %149 = sbr.rel (%p147) target = $region16
        $region15: #{tpu_custom_call.1} parent=11 // pred_region
          %s151 = ssub.s32 128, 128
          %152 = vsyncadd [#allocation6], %s151
          %s154 = sshll.u32 [#allocation5], 4
          %s155 = int_to_ptr.vmem [resolvable:$true] %s154
          %157 = dma.hbm_to_vmem [thread:$0]  %s1, 128, %s155, [#allocation6]
        $region16: #{tpu_custom_call.1} parent=11 // pred_fallthru
          _
        // Predicated region
        $region17: #{tpu_custom_call.1} parent=11 // pred_check
          %p158 = pneg %p85
        $region18: #{tpu_custom_call.1} parent=11 // pred_check_branch
          %160 = sbr.rel (%p158) target = $region20
        $region19: #{tpu_custom_call.1} parent=11 // pred_region
          %s162 = ssub.s32 512, 512
          %163 = vsyncadd [#allocation6], %s162
          %s164 = sshll.u32 [#allocation7], 4
          %s165 = int_to_ptr.vmem [resolvable:$true] %s164
          %170 = dma.hbm_to_vmem [thread:$0]  %s2, 512, %s165, [#allocation6], 128, 128, 8
        $region20: #{tpu_custom_call.1} parent=11 // pred_fallthru
          _
        // Predicated region
        $region21: #{tpu_custom_call.1} parent=11 // pred_check
          %p171 = pneg %p106
        $region22: #{tpu_custom_call.1} parent=11 // pred_check_branch
          %173 = sbr.rel (%p171) target = $region24
        $region23: #{tpu_custom_call.1} parent=11 // pred_region
          _
        $region24: #{tpu_custom_call.1} parent=11 // pred_fallthru
          _
      $region12: #{tpu_custom_call.1} parent=5 // pred_fallthru
        _
      %p174 = scmp.lt.s32.totalorder %s17, 2
      // Predicated region
      $region25: #{tpu_custom_call.1} parent=5 // pred_check
        %p175 = pneg %p174
      $region26: #{tpu_custom_call.1} parent=5 // pred_check_branch
        %177 = sbr.rel (%p175) target = $region28
      $region27: #{tpu_custom_call.1} parent=5 // pred_region
        // Predicated region
        $region29: #{tpu_custom_call.1} parent=27 // pred_check
          %p178 = pneg %p37
        $region30: #{tpu_custom_call.1} parent=27 // pred_check_branch
          %180 = sbr.rel (%p178) target = $region32
        $region31: #{tpu_custom_call.1} parent=27 // pred_region
          %s181 = sand.u32 %s27, 1
          %s182 = scalar_lea.sflag [#allocation3], %s181
          %s183 = sand.u32 %s27, 1
          %s184 = smul.addr %s183, 8
          %s185 = scalar_lea.vmem [#allocation2], %s184
          %s187 = ssub.s32 128, 128
          %188 = vsyncadd %s182, %s187
          %s189 = smul.addr %s17, 128
          %s190 = scalar_lea.hbm %s0, %s189
          %s192 = sshll.u32 %s185, 4
          %s193 = int_to_ptr.vmem [resolvable:$true] %s192
          %195 = dma.hbm_to_vmem [thread:$0]  %s190, 128, %s193, %s182
        $region32: #{tpu_custom_call.1} parent=27 // pred_fallthru
          _
      $region28: #{tpu_custom_call.1} parent=5 // pred_fallthru
        _
      %p196 = scmp.le.s32.totalorder 1, %s17
      %p197 = scmp.lt.s32.totalorder %s17, 3
      %p198 = pnand %p196, %p197
      %p199 = pneg %p198
      // Predicated region
      $region33: #{tpu_custom_call.1} parent=5 // pred_check
        _
      $region34: #{tpu_custom_call.1} parent=5 // pred_check_branch
        %201 = sbr.rel (%p198) target = $region36
      $region35: #{tpu_custom_call.1} parent=5 // pred_region
        %s202 = ssub.s32 %s17, 1
        %s203 = sand.u32 %s30, 1
        %s204 = scalar_lea.sflag [#allocation3], %s203
        %s205 = sand.u32 %s30, 1
        %s206 = smul.addr %s205, 8
        %s207 = scalar_lea.vmem [#allocation2], %s206
        // Predicated region
        $region37: #{tpu_custom_call.1} parent=35 // pred_check
          %p208 = pneg %p43
        $region38: #{tpu_custom_call.1} parent=35 // pred_check_branch
          %210 = sbr.rel (%p208) target = $region40
        $region39: #{tpu_custom_call.1} parent=35 // pred_region
          %211 = dma.done %s204, 128
        $region40: #{tpu_custom_call.1} parent=35 // pred_fallthru
          _
        // Predicated region
        $region41: #{tpu_custom_call.1} parent=35 // pred_check
          %p212 = pneg %p64
        $region42: #{tpu_custom_call.1} parent=35 // pred_check_branch
          %214 = sbr.rel (%p212) target = $region44
        $region43: #{tpu_custom_call.1} parent=35 // pred_region
          %215 = dma.done [#allocation6], 128
        $region44: #{tpu_custom_call.1} parent=35 // pred_fallthru
          _
        // Predicated region
        $region45: #{tpu_custom_call.1} parent=35 // pred_check
          %p216 = pneg %p85
        $region46: #{tpu_custom_call.1} parent=35 // pred_check_branch
          %218 = sbr.rel (%p216) target = $region48
        $region47: #{tpu_custom_call.1} parent=35 // pred_region
          %219 = dma.done [#allocation6], 512
        $region48: #{tpu_custom_call.1} parent=35 // pred_fallthru
          _
        %s220 = sand.u32 %s30, 1
        %s221 = scalar_lea.sflag [#allocation3], %s220
        %s222 = sand.u32 %s30, 1
        %s223 = smul.addr %s222, 8
        %s224 = scalar_lea.vmem [#allocation2], %s223
        %p225 = pneg %p43
        %p226 = pneg %p40
        %p227 = pneg %p64
        %p228 = pneg %p61
        %p229 = pneg %p85
        %p230 = pneg %p82
        %p231 = pneg %p106
        %p232 = pneg %p103
        %p233 = pneg %p132
        %p234 = pneg %p129
        %s235 = sand.u32 %s119, 1
        %s236 = scalar_lea.sflag [#allocation4], %s235
        %s237 = sand.u32 %s119, 1
        %s238 = scalar_lea.vmem [#allocation8], %s237
        %v239 = vld [vmem:[%s207] sm:$0xff]
        %v240 = vld [vmem:[#allocation7] sm:$0xff]
        %v241 = vld [vmem:[#allocation7 + $0x8] sm:$0xff]
        %v242 = vld [vmem:[#allocation7 + $0x10] sm:$0xff]
        %v243 = vld [vmem:[#allocation7 + $0x18] sm:$0xff]
        %v244 = vld [vmem:[#allocation5] sm:$0xff]
        %vm245 = vcmask 261120
        %v247 = vsel %vm245, %v239, 0
        %249 = vmatprep.subr.mxu0 0.0
        %250 = vmatpush1.msra.mxu0 0.0
        %251 = vmatprep.subr.mxu0 0.0
        %252 = vmatpush1.msra.mxu0 0.0
        %253 = vmatprep.subr.mxu0 0.0
        %254 = vmatpush1.msra.mxu0 0.0
        %255 = vmatprep.subr.mxu0 0.0
        %256 = vmatpush1.msra.mxu0 0.0
        %257 = vmatprep.subr.mxu0 0.0
        %258 = vmatpush1.msra.mxu0 0.0
        %259 = vmatprep.subr.mxu0 0.0
        %260 = vmatpush1.msra.mxu0 0.0
        %261 = vmatprep.subr.mxu0 0.0
        %262 = vmatpush1.msra.mxu0 0.0
        %263 = vmatprep.subr.mxu0 0.0
        %264 = vmatpush1.msra.mxu0 0.0
        %265 = vmatprep.subr.mxu0 0.0
        %266 = vmatpush1.msra.mxu0 0.0
        %267 = vmatprep.subr.mxu0 0.0
        %268 = vmatpush1.msra.mxu0 0.0
        %269 = vmatprep.subr.mxu0 0.0
        %270 = vmatpush1.msra.mxu0 0.0
        %271 = vmatprep.subr.mxu0 0.0
        %272 = vmatpush1.msra.mxu0 0.0
        %273 = vmatprep.subr.mxu0 0.0
        %274 = vmatpush1.msra.mxu0 %v243
        %275 = vmatprep.subr.mxu0 0.0
        %276 = vmatpush1.msra.mxu0 %v242
        %277 = vmatprep.subr.mxu0 0.0
        %278 = vmatpush1.msra.mxu0 %v241
        %279 = vmatprep.subr.mxu0 0.0
        %280 = vmatpush1.msra.mxu0 %v240
        %281 = vmatprep.subr.mxu0 0.0
        %282 = vmatpush2.msra.mxu0 0.0
        %283 = vmatprep.subr.mxu0 0.0
        %284 = vmatpush2.msra.mxu0 0.0
        %285 = vmatprep.subr.mxu0 0.0
        %286 = vmatpush2.msra.mxu0 0.0
        %287 = vmatprep.subr.mxu0 0.0
        %288 = vmatpush2.msra.mxu0 0.0
        %289 = vmatprep.subr.mxu0 0.0
        %290 = vmatpush2.msra.mxu0 0.0
        %291 = vmatprep.subr.mxu0 0.0
        %292 = vmatpush2.msra.mxu0 0.0
        %293 = vmatprep.subr.mxu0 0.0
        %294 = vmatpush2.msra.mxu0 0.0
        %295 = vmatprep.subr.mxu0 0.0
        %296 = vmatpush2.msra.mxu0 0.0
        %297 = vmatprep.subr.mxu0 0.0
        %298 = vmatpush2.msra.mxu0 0.0
        %299 = vmatprep.subr.mxu0 0.0
        %300 = vmatpush2.msra.mxu0 0.0
        %301 = vmatprep.subr.mxu0 0.0
        %302 = vmatpush2.msra.mxu0 0.0
        %303 = vmatprep.subr.mxu0 0.0
        %304 = vmatpush2.msra.mxu0 0.0
        %305 = vmatprep.subr.mxu0 0.0
        %306 = vmatpush2.msra.mxu0 0.0
        %307 = vmatprep.subr.mxu0 0.0
        %308 = vmatpush2.msra.mxu0 0.0
        %309 = vmatprep.subr.mxu0 0.0
        %310 = vmatpush2.msra.mxu0 0.0
        %311 = vmatprep.subr.mxu0 0.0
        %312 = vmatpush2.msra.mxu0 0.0
        %313 = vmatprep.mubr.f32.mxu0 0.0
        %314 = vmatmul.mubr.f32.gmra.mxu0 %v247
        %v315 = vpop.f32.mrf.mxu0
        %v316 = vadd.f32 %v244, %v315
        %v317 = vpop.f32.mrf.mxu0
        %318 = vdwg.mxu0
        %v319 = vtanh.pop %v316
        %v320 = vld [vmem:[%s3] sm:$0x1]
        %v322 = vsel %vm245, %v320, 0
        %v325 = vsel %vm245, %v319, 0
        %327 = vmatprep.subr.mxu0 0.0
        %328 = vmatpush1.xpose.msra.mxu0 0.0
        %329 = vmatprep.subr.mxu0 0.0
        %330 = vmatpush1.xpose.msra.mxu0 0.0
        %331 = vmatprep.subr.mxu0 0.0
        %332 = vmatpush1.xpose.msra.mxu0 0.0
        %333 = vmatprep.subr.mxu0 0.0
        %334 = vmatpush1.xpose.msra.mxu0 0.0
        %335 = vmatprep.subr.mxu0 0.0
        %336 = vmatpush1.xpose.msra.mxu0 0.0
        %337 = vmatprep.subr.mxu0 0.0
        %338 = vmatpush1.xpose.msra.mxu0 0.0
        %339 = vmatprep.subr.mxu0 0.0
        %340 = vmatpush1.xpose.msra.mxu0 0.0
        %341 = vmatprep.subr.mxu0 0.0
        %342 = vmatpush1.xpose.msra.mxu0 0.0
        %343 = vmatprep.subr.mxu0 0.0
        %344 = vmatpush1.xpose.msra.mxu0 0.0
        %345 = vmatprep.subr.mxu0 0.0
        %346 = vmatpush1.xpose.msra.mxu0 0.0
        %347 = vmatprep.subr.mxu0 0.0
        %348 = vmatpush1.xpose.msra.mxu0 0.0
        %349 = vmatprep.subr.mxu0 0.0
        %350 = vmatpush1.xpose.msra.mxu0 0.0
        %351 = vmatprep.subr.mxu0 0.0
        %352 = vmatpush1.xpose.msra.mxu0 0.0
        %353 = vmatprep.subr.mxu0 0.0
        %354 = vmatpush1.xpose.msra.mxu0 0.0
        %355 = vmatprep.subr.mxu0 0.0
        %356 = vmatpush1.xpose.msra.mxu0 0.0
        %357 = vmatprep.subr.mxu0 0.0
        %358 = vmatpush1.xpose.msra.mxu0 %v325
        %359 = vmatprep.subr.mxu0 0.0
        %360 = vmatpush2.xpose.msra.mxu0 0.0
        %361 = vmatprep.subr.mxu0 0.0
        %362 = vmatpush2.xpose.msra.mxu0 0.0
        %363 = vmatprep.subr.mxu0 0.0
        %364 = vmatpush2.xpose.msra.mxu0 0.0
        %365 = vmatprep.subr.mxu0 0.0
        %366 = vmatpush2.xpose.msra.mxu0 0.0
        %367 = vmatprep.subr.mxu0 0.0
        %368 = vmatpush2.xpose.msra.mxu0 0.0
        %369 = vmatprep.subr.mxu0 0.0
        %370 = vmatpush2.xpose.msra.mxu0 0.0
        %371 = vmatprep.subr.mxu0 0.0
        %372 = vmatpush2.xpose.msra.mxu0 0.0
        %373 = vmatprep.subr.mxu0 0.0
        %374 = vmatpush2.xpose.msra.mxu0 0.0
        %375 = vmatprep.subr.mxu0 0.0
        %376 = vmatpush2.xpose.msra.mxu0 0.0
        %377 = vmatprep.subr.mxu0 0.0
        %378 = vmatpush2.xpose.msra.mxu0 0.0
        %379 = vmatprep.subr.mxu0 0.0
        %380 = vmatpush2.xpose.msra.mxu0 0.0
        %381 = vmatprep.subr.mxu0 0.0
        %382 = vmatpush2.xpose.msra.mxu0 0.0
        %383 = vmatprep.subr.mxu0 0.0
        %384 = vmatpush2.xpose.msra.mxu0 0.0
        %385 = vmatprep.subr.mxu0 0.0
        %386 = vmatpush2.xpose.msra.mxu0 0.0
        %387 = vmatprep.subr.mxu0 0.0
        %388 = vmatpush2.xpose.msra.mxu0 0.0
        %389 = vmatprep.subr.mxu0 0.0
        %390 = vmatpush2.xpose.msra.mxu0 0.0
        %391 = vmatprep.mubr.f32.mxu0 0.0
        %392 = vmatmul.mubr.f32.gmra.mxu0 %v322
        %v393 = vpop.f32.mrf.mxu0
        %v394 = vadd.f32 0.0, %v393
        %v395 = vpop.f32.mrf.mxu0
        %396 = vdwg.mxu0
        %v397 = vxor.u32 %v394, 2147483648
        %v398 = vmul.f32 %v397, 1.442695
        %v399 = vpow.pop %v398
        %v400 = vadd.f32 %v399, 1.0
        %v401 = vrcp.pop %v400
        %v402 = vmul.f32 1.0, %v401
        %vm403 = vcmask 57344
        %404 = vst.msk [vmem:[%s238] sm:$0x1] %vm403, %v402
        %s405 = sand.u32 %s119, 1
        %s406 = scalar_lea.sflag [#allocation4], %s405
        %s407 = sand.u32 %s119, 1
        %s408 = scalar_lea.vmem [#allocation8], %s407
        // Predicated region
        $region49: #{tpu_custom_call.1} parent=35 // pred_check
          %p409 = pneg %p129
        $region50: #{tpu_custom_call.1} parent=35 // pred_check_branch
          %411 = sbr.rel (%p409) target = $region52
        $region51: #{tpu_custom_call.1} parent=35 // pred_region
          %s413 = ssub.s32 16, 16
          %414 = vsyncadd %s406, %s413
          %s415 = smul.addr %s22, 16
          %s416 = scalar_lea.hbm %s4, %s415
          %s418 = sshll.u32 %s408, 4
          %s419 = int_to_ptr.vmem [resolvable:$true] %s418
          %421 = dma.vmem_to_hbm [thread:$0]  %s419, 16, %s416, %s406
        $region52: #{tpu_custom_call.1} parent=35 // pred_fallthru
          _
      $region36: #{tpu_custom_call.1} parent=5 // pred_fallthru
        _
      %p422 = scmp.le.s32.totalorder 2, %s17
      // Predicated region
      $region53: #{tpu_custom_call.1} parent=5 // pred_check
        %p423 = pneg %p422
      $region54: #{tpu_custom_call.1} parent=5 // pred_check_branch
        %425 = sbr.rel (%p423) target = $region56
      $region55: #{tpu_custom_call.1} parent=5 // pred_region
        %s426 = ssub.s32 %s17, 2
        // Predicated region
        $region57: #{tpu_custom_call.1} parent=55 // pred_check
          %p427 = pneg %p135
        $region58: #{tpu_custom_call.1} parent=55 // pred_check_branch
          %429 = sbr.rel (%p427) target = $region60
        $region59: #{tpu_custom_call.1} parent=55 // pred_region
          %s430 = sand.u32 %s120, 1
          %s431 = scalar_lea.sflag [#allocation4], %s430
          %s432 = sand.u32 %s120, 1
          %s433 = scalar_lea.vmem [#allocation8], %s432
          %434 = dma.done %s431, 16
        $region60: #{tpu_custom_call.1} parent=55 // pred_fallthru
          _
      $region56: #{tpu_custom_call.1} parent=5 // pred_fallthru
        _
    $region6: #{tpu_custom_call.1} parent=1 // loop_footer
      %s21 = sadd.s32 1, %s17
    $region7: #{tpu_custom_call.1} parent=1 // loop_footer_branch
      %16 = sbr.rel target = $region3
    $region8: #{tpu_custom_call.1} parent=1 // loop_exit
      _
    %435 = vsyncpa [#allocation3], 1
    %s436 = scalar_lea.sflag [#allocation3], 1
    %437 = vsyncpa %s436, 1
    %438 = vsyncpa [#allocation6], 1
    %439 = vsyncpa [#allocation4], 1
    %s440 = scalar_lea.sflag [#allocation4], 1
    %441 = vsyncpa %s440, 1

</llo_original>
